<compile_context>
chip_gen: v6e
topology: v6e:2x2x1
jax: 0.10.0
libtpu: 0.0.40
codegen_flags: <defaults>
</compile_context>

<pallas_src>
import functools

import jax
import jax.numpy as jnp
from jax import lax
from jax.experimental import pallas as pl
from jax.experimental.pallas import tpu as pltpu


def _bottleneck_kernel(H, alpha_ref, x_ref, w1_ref, b1_ref, w2_ref, b2_ref,
                       w3_ref, b3_ref, out_ref):
    # PReLU slopes: read once per grid step (SMEM scalars).
    a1 = alpha_ref[0]
    a2 = alpha_ref[1]
    a3 = alpha_ref[2]

    x = x_ref[...]                            # (M, W*Cin) f32, lane-dense rows
    M = x.shape[0]

    # ---- extension_conv1: 1x1 conv (block-diag bf16 weights, BN folded) ----
    y1 = jnp.dot(x.astype(jnp.bfloat16), w1_ref[...],
                 preferred_element_type=jnp.float32) + b1_ref[...]
    y1 = jnp.where(y1 >= 0, y1, a1 * y1)

    # ---- extension_conv2: 3x3 conv, stride=1, pad=1 (SAME) ----
    # One wide MXU op: the three vertical taps sit side by side along the
    # output (lane) axis of w2; the banded matrices already carry the three
    # horizontal taps and the horizontal zero-padding.
    z = jnp.dot(y1.astype(jnp.bfloat16), w2_ref[...],
                preferred_element_type=jnp.float32)          # (M, 3*W*CM)
    wcm = w2_ref.shape[0]                                     # = W*CM
    z_top = z[:, :wcm]                    # tap dh=0: contribution of y1[h-1]
    z_mid = z[:, wcm:2 * wcm]             # tap dh=1: contribution of y1[h]
    z_bot = z[:, 2 * wcm:]                # tap dh=2: contribution of y1[h+1]

    # Vertical +-1 shifts on the sublane axis (XLU) + per-image border zeroing.
    # Rows are packed (image, h), so row-within-image = row % H.
    rid = lax.broadcasted_iota(jnp.int32, (M, wcm), 0) % H
    t_top = jnp.where(rid == 0, 0.0, pltpu.roll(z_top, shift=1, axis=0))
    t_bot = jnp.where(rid == H - 1, 0.0, pltpu.roll(z_bot, shift=M - 1, axis=0))

    y2 = t_top + z_mid + t_bot + b2_ref[...]
    y2 = jnp.where(y2 >= 0, y2, a2 * y2)

    # ---- extension_conv3: 1x1 conv + folded BN (Dropout2d(p=0) == identity) ----
    y3 = jnp.dot(y2.astype(jnp.bfloat16), w3_ref[...],
                 preferred_element_type=jnp.float32) + b3_ref[...]

    # ---- main branch (identity) + extension, final PReLU; one dense store ----
    o = x + y3                               # reuse the already-loaded x
    out_ref[...] = jnp.where(o >= 0, o, a3 * o)


def prepare_params(params, W):
    """Fold BN into the conv weights and pack them for the lane-dense kernel.

    Runs ONCE per parameter set (outside the hot path).  Returns bf16 matmul
    weights, f32 biases and PReLU slopes for regular_bottleneck_packed.
    """
    (w1, s1, b1, w2, s2, b2, w3, s3, b3, alphas) = params
    cin, cm = w1.shape
    cout = w3.shape[1]

    # Fold BN scales into conv weights; only per-channel bias adds remain.
    w1s = w1 * s1.reshape(1, cm)
    w2s = w2 * s2.reshape(1, 1, 1, cm)                 # (3, 3, CM, CM) HWIO
    w3s = w3 * s3.reshape(1, cout)

    eye_w = jnp.eye(W, dtype=jnp.float32)

    def block_diag(w):
        ci, co = w.shape
        return jnp.einsum('uv,cd->ucvd', eye_w, w).reshape(W * ci, W * co)

    def band(dh):
        m = jnp.zeros((W * cm, W * cm), jnp.float32)
        for dw in range(3):
            shift = jnp.eye(W, k=1 - dw, dtype=jnp.float32)  # w_in = w_out+dw-1
            m = m + jnp.einsum('uv,cd->ucvd', shift,
                               w2s[dh, dw]).reshape(W * cm, W * cm)
        return m

    w1_big = block_diag(w1s).astype(jnp.bfloat16)             # (W*Cin, W*CM)
    w3_big = block_diag(w3s).astype(jnp.bfloat16)             # (W*CM, W*Cout)
    # All three vertical taps concatenated along the output (lane) axis.
    w2_big = jnp.concatenate([band(0), band(1), band(2)],
                             axis=1).astype(jnp.bfloat16)     # (W*CM, 3*W*CM)

    b1_big = jnp.tile(b1.reshape(-1), W).reshape(1, W * cm).astype(jnp.float32)
    b2_big = jnp.tile(b2.reshape(-1), W).reshape(1, W * cm).astype(jnp.float32)
    b3_big = jnp.tile(b3.reshape(-1), W).reshape(1, W * cout).astype(jnp.float32)

    return (alphas.astype(jnp.float32), w1_big, b1_big, w2_big, b2_big,
            w3_big, b3_big)


@functools.partial(jax.jit, static_argnames=("H", "num_blocks"))
def regular_bottleneck_packed(x_flat, alphas, w1_big, b1_big, w2_big, b2_big,
                              w3_big, b3_big, *, H, num_blocks=1):
    """Hot-path entry point.  x_flat: (N*H, W*Cin) f32, rows packed (image, h)."""
    M, wcin = x_flat.shape
    wcm = w2_big.shape[0]
    wcout = w3_big.shape[1]
    if wcin != wcout:
        raise ValueError("regular (non-downsample) bottleneck needs Cin == Cout")
    if M % num_blocks != 0:
        raise ValueError("num_blocks must divide N*H")
    mb = M // num_blocks
    if mb % H != 0:
        raise ValueError("each grid block must hold whole images")
    if num_blocks > 1 and mb % 8 != 0:
        raise ValueError("per-block rows must be a multiple of 8")

    kernel = functools.partial(_bottleneck_kernel, H)

    def full(shape):
        nd = len(shape)
        return pl.BlockSpec(shape, lambda g, _nd=nd: (0,) * _nd)

    return pl.pallas_call(
        kernel,
        out_shape=jax.ShapeDtypeStruct((M, wcout), jnp.float32),
        grid=(num_blocks,),
        in_specs=[
            pl.BlockSpec(memory_space=pltpu.MemorySpace.SMEM),   # PReLU alphas
            pl.BlockSpec((mb, wcin), lambda g: (g, 0)),          # x rows
            full((wcin, wcm)), full((1, wcm)),                   # conv1 + BN1
            full((wcm, 3 * wcm)), full((1, wcm)),                # conv2 + BN2
            full((wcm, wcout)), full((1, wcout)),                # conv3 + BN3
        ],
        out_specs=pl.BlockSpec((mb, wcout), lambda g: (g, 0)),
        compiler_params=pltpu.CompilerParams(
            dimension_semantics=("parallel",)),
    )(alphas, x_flat, w1_big, b1_big, w2_big, b2_big, w3_big, b3_big)


def _default_num_blocks(N, H):
    """Use 2 'parallel' blocks on 2-TensorCore chips (v7x); 1 elsewhere."""
    try:
        kind = jax.devices()[0].device_kind.lower()
    except Exception:
        kind = ""
    if ("v7" in kind or "7x" in kind) and N % 2 == 0 and ((N // 2) * H) % 8 == 0:
        return 2
    return 1


def regular_bottleneck_nchw(x_nchw, prepared, num_blocks=None):
    """Convenience wrapper taking/returning PyTorch NCHW layout."""
    N, Cin, H, W = x_nchw.shape
    if num_blocks is None:
        num_blocks = _default_num_blocks(N, H)
    x_flat = jnp.transpose(x_nchw, (0, 2, 3, 1)).reshape(N * H, W * Cin)
    out_flat = regular_bottleneck_packed(x_flat, *prepared, H=H,
                                         num_blocks=num_blocks)
    cout = out_flat.shape[1] // W
    return jnp.transpose(out_flat.reshape(N, H, W, cout), (0, 3, 1, 2))


def init_params(key, cin, cm, cout, eps=1e-5):
    """Deterministic synthetic parameters; BN folded to per-channel scale/bias."""
    ks = jax.random.split(key, 8)

    def bn(k, c):
        kg, kb, km, kv = jax.random.split(k, 4)
        gamma = jax.random.uniform(kg, (c,), minval=0.5, maxval=1.5)
        beta = 0.1 * jax.random.normal(kb, (c,))
        mean = 0.1 * jax.random.normal(km, (c,))
        var = jax.random.uniform(kv, (c,), minval=0.5, maxval=1.5)
        s = gamma / jnp.sqrt(var + eps)
        b = beta - mean * s
        return (s.reshape(1, c).astype(jnp.float32),
                b.reshape(1, c).astype(jnp.float32))

    w1 = 0.3 * jax.random.normal(ks[0], (cin, cm), jnp.float32)        # 1x1 (in,out)
    w2 = 0.2 * jax.random.normal(ks[1], (3, 3, cm, cm), jnp.float32)   # HWIO
    w3 = 0.3 * jax.random.normal(ks[2], (cm, cout), jnp.float32)       # 1x1 (in,out)
    s1, b1 = bn(ks[3], cm)
    s2, b2 = bn(ks[4], cm)
    s3, b3 = bn(ks[5], cout)
    alphas = jnp.full((3,), 0.25, jnp.float32)    # nn.PReLU() default init
    return (w1, s1, b1, w2, s2, b2, w3, s3, b3, alphas)


def reference(x_nchw, params, matmul_dtype=jnp.float32):
    """Pure-JAX reference (eval-mode / folded-BN semantics).

    matmul_dtype=jnp.bfloat16 mirrors the kernel's MXU input precision
    (bf16 inputs, f32 accumulation, f32 elementwise) for a tight comparison.
    """
    (w1, s1, b1, w2, s2, b2, w3, s3, b3, alphas) = params
    a1, a2, a3 = alphas[0], alphas[1], alphas[2]
    prelu = lambda v, a: jnp.where(v >= 0, v, a * v)
    md = matmul_dtype

    x = jnp.transpose(x_nchw, (0, 2, 3, 1)).astype(jnp.float32)   # NHWC
    w1s = (w1 * s1.reshape(1, -1)).astype(md)
    w2s = (w2 * s2.reshape(1, 1, 1, -1)).astype(md)
    w3s = (w3 * s3.reshape(1, -1)).astype(md)

    y1 = jnp.einsum('nhwc,cd->nhwd', x.astype(md), w1s,
                    preferred_element_type=jnp.float32) + b1[0]
    y1 = prelu(y1, a1)
    y2 = lax.conv_general_dilated(
        y1.astype(md), w2s, window_strides=(1, 1), padding='SAME',
        dimension_numbers=('NHWC', 'HWIO', 'NHWC'),
        preferred_element_type=jnp.float32) + b2[0]
    y2 = prelu(y2, a2)
    y3 = jnp.einsum('nhwc,cd->nhwd', y2.astype(md), w3s,
                    preferred_element_type=jnp.float32) + b3[0]
    out = prelu(x + y3, a3)
    return jnp.transpose(out, (0, 3, 1, 2))


if __name__ == "__main__":
    key = jax.random.PRNGKey(0)
    kx, kp = jax.random.split(key)

    N, C, H, W = 2, 8, 16, 16     # input_channel = output_channel = 8; W*C = 128
    CM = 8                        # internal_channel = 8

    x = jax.random.normal(kx, (N, C, H, W), jnp.float32)   # NCHW, like PyTorch
    params = init_params(kp, C, CM, C)

    # One-time weight prep + one-time layout change (hoisted out of hot path).
    prepared = prepare_params(params, W)
    x_flat = jnp.transpose(x, (0, 2, 3, 1)).reshape(N * H, W * C)

    num_blocks = _default_num_blocks(N, H)
    out_flat = regular_bottleneck_packed(x_flat, *prepared, H=H,
                                         num_blocks=num_blocks)
    out_flat = jax.block_until_ready(out_flat)
    out = jnp.transpose(out_flat.reshape(N, H, W, C), (0, 3, 1, 2))

    assert out.shape == (N, C, H, W)

    # Tight check vs a reference that mirrors the kernel's bf16-input MXU math.
    ref_bf16 = reference(x, params, matmul_dtype=jnp.bfloat16)
    err_bf16 = float(jnp.max(jnp.abs(out - ref_bf16)))
    if not err_bf16 < 5e-3:
        raise AssertionError(
            f"kernel vs bf16-matmul reference mismatch, max abs err = {err_bf16}")

    # Loose sanity check vs the pure-f32 reference (bf16 rounding budget).
    ref_f32 = reference(x, params, matmul_dtype=jnp.float32)
    err_f32 = float(jnp.max(jnp.abs(out - ref_f32)))
    if not err_f32 < 2e-1:
        raise AssertionError(
            f"kernel vs f32 reference mismatch, max abs err = {err_f32}")

    print("KERNEL_OK")
</pallas_src>

<mosaic_0001>
module attributes {stable_mosaic.version = 11 : i64} {
  func.func @_bottleneck_kernel(%arg0: i32, %arg1: memref<3xf32, #tpu.memory_space<smem>>, %arg2: memref<32x128xf32, #tpu.memory_space<vmem>>, %arg3: memref<128x128xbf16, #tpu.memory_space<vmem>>, %arg4: memref<1x128xf32, #tpu.memory_space<vmem>>, %arg5: memref<128x384xbf16, #tpu.memory_space<vmem>>, %arg6: memref<1x128xf32, #tpu.memory_space<vmem>>, %arg7: memref<128x128xbf16, #tpu.memory_space<vmem>>, %arg8: memref<1x128xf32, #tpu.memory_space<vmem>>, %arg9: memref<32x128xf32, #tpu.memory_space<vmem>>) attributes {dimension_semantics = [#tpu.dimension_semantics<parallel>], iteration_bounds = array<i64: 1>, scalar_prefetch = 0 : i64, scratch_operands = 0 : i64, tpu.core_type = #tpu.core_type<tc>, window_params = [{transform_indices = @transform_0, window_bounds = array<i64: 3>}, {transform_indices = @transform_1, window_bounds = array<i64: 32, 128>}, {pipeline_mode = #tpu.pipeline_mode<synchronous>, transform_indices = @transform_2, window_bounds = array<i64: 128, 128>}, {pipeline_mode = #tpu.pipeline_mode<synchronous>, transform_indices = @transform_3, window_bounds = array<i64: 1, 128>}, {pipeline_mode = #tpu.pipeline_mode<synchronous>, transform_indices = @transform_4, window_bounds = array<i64: 128, 384>}, {pipeline_mode = #tpu.pipeline_mode<synchronous>, transform_indices = @transform_5, window_bounds = array<i64: 1, 128>}, {pipeline_mode = #tpu.pipeline_mode<synchronous>, transform_indices = @transform_6, window_bounds = array<i64: 128, 128>}, {pipeline_mode = #tpu.pipeline_mode<synchronous>, transform_indices = @transform_7, window_bounds = array<i64: 1, 128>}, {transform_indices = @transform_8, window_bounds = array<i64: 32, 128>}]} {
    %c0 = arith.constant 0 : index
    %0 = memref.load %arg1[%c0] : memref<3xf32, #tpu.memory_space<smem>>
    %c1 = arith.constant 1 : index
    %1 = memref.load %arg1[%c1] : memref<3xf32, #tpu.memory_space<smem>>
    %c2 = arith.constant 2 : index
    %2 = memref.load %arg1[%c2] : memref<3xf32, #tpu.memory_space<smem>>
    %c0_0 = arith.constant 0 : index
    %c0_1 = arith.constant 0 : index
    %3 = vector.load %arg2[%c0_0, %c0_1] : memref<32x128xf32, #tpu.memory_space<vmem>>, vector<32x128xf32>
    %4 = arith.truncf %3 : vector<32x128xf32> to vector<32x128xbf16>
    %c0_2 = arith.constant 0 : index
    %c0_3 = arith.constant 0 : index
    %5 = vector.load %arg3[%c0_2, %c0_3] : memref<128x128xbf16, #tpu.memory_space<vmem>>, vector<128x128xbf16>
    %cst = arith.constant dense<0.000000e+00> : vector<32x128xf32>
    %6 = tpu.matmul %4, %5, %cst {dimension_numbers = #tpu.dot_dimension_numbers<[1], [0], [0], [1], [0, 0, 1, 1], [], []>} : vector<32x128xbf16>, vector<128x128xbf16>, vector<32x128xf32> -> vector<32x128xf32>
    %c0_4 = arith.constant 0 : index
    %c0_5 = arith.constant 0 : index
    %7 = vector.load %arg4[%c0_4, %c0_5] : memref<1x128xf32, #tpu.memory_space<vmem>>, vector<1x128xf32>
    %8 = vector.broadcast %7 : vector<1x128xf32> to vector<32x128xf32>
    %9 = arith.addf %6, %8 : vector<32x128xf32>
    %cst_6 = arith.constant 0.000000e+00 : f32
    %10 = vector.broadcast %cst_6 : f32 to vector<32x128xf32>
    %11 = arith.cmpf oge, %9, %10 : vector<32x128xf32>
    %12 = vector.broadcast %0 : f32 to vector<32x128xf32>
    %13 = arith.mulf %12, %9 : vector<32x128xf32>
    %14 = arith.select %11, %9, %13 : vector<32x128xi1>, vector<32x128xf32>
    %15 = arith.truncf %14 : vector<32x128xf32> to vector<32x128xbf16>
    %c0_7 = arith.constant 0 : index
    %c0_8 = arith.constant 0 : index
    %16 = vector.load %arg5[%c0_7, %c0_8] : memref<128x384xbf16, #tpu.memory_space<vmem>>, vector<128x384xbf16>
    %cst_9 = arith.constant dense<0.000000e+00> : vector<32x384xf32>
    %17 = tpu.matmul %15, %16, %cst_9 {dimension_numbers = #tpu.dot_dimension_numbers<[1], [0], [0], [1], [0, 0, 1, 1], [], []>} : vector<32x128xbf16>, vector<128x384xbf16>, vector<32x384xf32> -> vector<32x384xf32>
    %18 = vector.extract_strided_slice %17 {offsets = [0, 0], sizes = [32, 128], strides = [1, 1]} : vector<32x384xf32> to vector<32x128xf32>
    %19 = vector.extract_strided_slice %17 {offsets = [0, 128], sizes = [32, 128], strides = [1, 1]} : vector<32x384xf32> to vector<32x128xf32>
    %20 = vector.extract_strided_slice %17 {offsets = [0, 256], sizes = [32, 128], strides = [1, 1]} : vector<32x384xf32> to vector<32x128xf32>
    %21 = tpu.iota {dimensions = array<i32: 0>} : vector<32x128xi32>
    %c16_i32 = arith.constant 16 : i32
    %c0_i32 = arith.constant 0 : i32
    %22 = arith.cmpi eq, %c16_i32, %c0_i32 : i32
    %c1_i32 = arith.constant 1 : i32
    %23 = arith.select %22, %c1_i32, %c16_i32 : i32
    %24 = vector.broadcast %23 : i32 to vector<32x128xi32>
    %25 = arith.remsi %21, %24 : vector<32x128xi32>
    %c0_i32_10 = arith.constant 0 : i32
    %26 = vector.broadcast %c0_i32_10 : i32 to vector<32x128xi32>
    %27 = arith.cmpi ne, %25, %26 : vector<32x128xi32>
    %c0_i32_11 = arith.constant 0 : i32
    %28 = vector.broadcast %c0_i32_11 : i32 to vector<32x128xi32>
    %29 = arith.cmpi slt, %25, %28 : vector<32x128xi32>
    %c0_i32_12 = arith.constant 0 : i32
    %30 = arith.cmpi slt, %23, %c0_i32_12 : i32
    %31 = vector.broadcast %30 : i1 to vector<32x128xi1>
    %32 = vector.broadcast %31 : vector<32x128xi1> to vector<32x128xi1>
    %33 = arith.xori %29, %32 : vector<32x128xi1>
    %34 = arith.andi %33, %27 : vector<32x128xi1>
    %35 = vector.broadcast %23 : i32 to vector<32x128xi32>
    %36 = arith.addi %25, %35 : vector<32x128xi32>
    %37 = arith.select %34, %36, %25 : vector<32x128xi1>, vector<32x128xi32>
    %c0_i32_13 = arith.constant 0 : i32
    %38 = vector.broadcast %c0_i32_13 : i32 to vector<32x128xi32>
    %39 = arith.cmpi eq, %37, %38 : vector<32x128xi32>
    %c1_i32_14 = arith.constant 1 : i32
    %40 = tpu.dynamic_rotate %18 by %c1_i32_14 dim 0 : vector<32x128xf32>, i32 -> vector<32x128xf32>
    %cst_15 = arith.constant 0.000000e+00 : f32
    %41 = vector.broadcast %cst_15 : f32 to vector<32x128xf32>
    %42 = arith.select %39, %41, %40 : vector<32x128xi1>, vector<32x128xf32>
    %c15_i32 = arith.constant 15 : i32
    %43 = vector.broadcast %c15_i32 : i32 to vector<32x128xi32>
    %44 = arith.cmpi eq, %37, %43 : vector<32x128xi32>
    %c31_i32 = arith.constant 31 : i32
    %45 = tpu.dynamic_rotate %20 by %c31_i32 dim 0 : vector<32x128xf32>, i32 -> vector<32x128xf32>
    %cst_16 = arith.constant 0.000000e+00 : f32
    %46 = vector.broadcast %cst_16 : f32 to vector<32x128xf32>
    %47 = arith.select %44, %46, %45 : vector<32x128xi1>, vector<32x128xf32>
    %48 = arith.addf %42, %19 : vector<32x128xf32>
    %49 = arith.addf %48, %47 : vector<32x128xf32>
    %c0_17 = arith.constant 0 : index
    %c0_18 = arith.constant 0 : index
    %50 = vector.load %arg6[%c0_17, %c0_18] : memref<1x128xf32, #tpu.memory_space<vmem>>, vector<1x128xf32>
    %51 = vector.broadcast %50 : vector<1x128xf32> to vector<32x128xf32>
    %52 = arith.addf %49, %51 : vector<32x128xf32>
    %cst_19 = arith.constant 0.000000e+00 : f32
    %53 = vector.broadcast %cst_19 : f32 to vector<32x128xf32>
    %54 = arith.cmpf oge, %52, %53 : vector<32x128xf32>
    %55 = vector.broadcast %1 : f32 to vector<32x128xf32>
    %56 = arith.mulf %55, %52 : vector<32x128xf32>
    %57 = arith.select %54, %52, %56 : vector<32x128xi1>, vector<32x128xf32>
    %58 = arith.truncf %57 : vector<32x128xf32> to vector<32x128xbf16>
    %c0_20 = arith.constant 0 : index
    %c0_21 = arith.constant 0 : index
    %59 = vector.load %arg7[%c0_20, %c0_21] : memref<128x128xbf16, #tpu.memory_space<vmem>>, vector<128x128xbf16>
    %cst_22 = arith.constant dense<0.000000e+00> : vector<32x128xf32>
    %60 = tpu.matmul %58, %59, %cst_22 {dimension_numbers = #tpu.dot_dimension_numbers<[1], [0], [0], [1], [0, 0, 1, 1], [], []>} : vector<32x128xbf16>, vector<128x128xbf16>, vector<32x128xf32> -> vector<32x128xf32>
    %c0_23 = arith.constant 0 : index
    %c0_24 = arith.constant 0 : index
    %61 = vector.load %arg8[%c0_23, %c0_24] : memref<1x128xf32, #tpu.memory_space<vmem>>, vector<1x128xf32>
    %62 = vector.broadcast %61 : vector<1x128xf32> to vector<32x128xf32>
    %63 = arith.addf %60, %62 : vector<32x128xf32>
    %64 = arith.addf %3, %63 : vector<32x128xf32>
    %cst_25 = arith.constant 0.000000e+00 : f32
    %65 = vector.broadcast %cst_25 : f32 to vector<32x128xf32>
    %66 = arith.cmpf oge, %64, %65 : vector<32x128xf32>
    %67 = vector.broadcast %2 : f32 to vector<32x128xf32>
    %68 = arith.mulf %67, %64 : vector<32x128xf32>
    %69 = arith.select %66, %64, %68 : vector<32x128xi1>, vector<32x128xf32>
    %c0_26 = arith.constant 0 : index
    %c0_27 = arith.constant 0 : index
    %70 = vector.load %arg9[%c0_26, %c0_27] : memref<32x128xf32, #tpu.memory_space<vmem>>, vector<32x128xf32>
    tpu.vector_store %arg9[%c0_26, %c0_27], %69 {strides = array<i32>} : memref<32x128xf32, #tpu.memory_space<vmem>>, vector<32x128xf32>,
    return
  }
  func.func @transform_0(%arg0: i32) -> i32 {
    %c0_i32 = arith.constant 0 : i32
    %c0_i32_0 = arith.constant 0 : i32
    return %c0_i32 : i32
  }
  func.func @transform_1(%arg0: i32) -> (i32, i32) {
    %c0_i32 = arith.constant 0 : i32
    %c0_i32_0 = arith.constant 0 : i32
    return %arg0, %c0_i32 : i32, i32
  }
  func.func @transform_2(%arg0: i32) -> (i32, i32) {
    %c0_i32 = arith.constant 0 : i32
    %c0_i32_0 = arith.constant 0 : i32
    %c0_i32_1 = arith.constant 0 : i32
    return %c0_i32, %c0_i32_0 : i32, i32
  }
  func.func @transform_3(%arg0: i32) -> (i32, i32) {
    %c0_i32 = arith.constant 0 : i32
    %c0_i32_0 = arith.constant 0 : i32
    %c0_i32_1 = arith.constant 0 : i32
    return %c0_i32, %c0_i32_0 : i32, i32
  }
  func.func @transform_4(%arg0: i32) -> (i32, i32) {
    %c0_i32 = arith.constant 0 : i32
    %c0_i32_0 = arith.constant 0 : i32
    %c0_i32_1 = arith.constant 0 : i32
    return %c0_i32, %c0_i32_0 : i32, i32
  }
  func.func @transform_5(%arg0: i32) -> (i32, i32) {
    %c0_i32 = arith.constant 0 : i32
    %c0_i32_0 = arith.constant 0 : i32
    %c0_i32_1 = arith.constant 0 : i32
    return %c0_i32, %c0_i32_0 : i32, i32
  }
  func.func @transform_6(%arg0: i32) -> (i32, i32) {
    %c0_i32 = arith.constant 0 : i32
    %c0_i32_0 = arith.constant 0 : i32
    %c0_i32_1 = arith.constant 0 : i32
    return %c0_i32, %c0_i32_0 : i32, i32
  }
  func.func @transform_7(%arg0: i32) -> (i32, i32) {
    %c0_i32 = arith.constant 0 : i32
    %c0_i32_0 = arith.constant 0 : i32
    %c0_i32_1 = arith.constant 0 : i32
    return %c0_i32, %c0_i32_0 : i32, i32
  }
  func.func @transform_8(%arg0: i32) -> (i32, i32) {
    %c0_i32 = arith.constant 0 : i32
    %c0_i32_0 = arith.constant 0 : i32
    return %arg0, %c0_i32 : i32, i32
  }
}

</mosaic_0001>

<llo_original>
// kernel: regular_bottleneck_packed.1
$region0: #{regular_bottleneck_packed.1}
  #allocation0 [shape = 'u32[]', space=smem, size = 0x4, offset = 0x4, fixed_abs, tag = 'smem constant byte address 0x4 - core index']
  #allocation1 [shape = 'u32[144,128]{1,0:T(1,128)}', space=vmem, size = 0x12000, scoped, tag = 'internal scratch']
  %s0 = inlined_call_operand.vmem [shape: f32[3], index: 0, kind: input, shape index: {}]
  %s1 = inlined_call_operand.hbm [shape: f32[32,128], index: 1, kind: input, shape index: {}]
  %s2 = inlined_call_operand.hbm [shape: bf16[128,128], index: 2, kind: input, shape index: {}]
  %s3 = inlined_call_operand.vmem [shape: f32[1,128], index: 3, kind: input, shape index: {}]
  %s4 = inlined_call_operand.hbm [shape: bf16[128,384], index: 4, kind: input, shape index: {}]
  %s5 = inlined_call_operand.vmem [shape: f32[1,128], index: 5, kind: input, shape index: {}]
  %s6 = inlined_call_operand.hbm [shape: bf16[128,128], index: 6, kind: input, shape index: {}]
  %s7 = inlined_call_operand.vmem [shape: f32[1,128], index: 7, kind: input, shape index: {}]
  %s8 = inlined_call_operand.hbm [shape: f32[32,128], index: 8, kind: output, shape index: {}]
  %s9 = sld [smem:[#allocation0]]
  $region62: #{regular_bottleneck_packed.1} parent=0
    _
  %s11 = ssub.s32 1, %s9
  %s12 = scalar_select 0, %s11, %s9
  $region1: #{regular_bottleneck_packed.1} parent=0
    #allocation2 [shape = 'u8[512]{0}', space=smem, size = 0x200, scoped, tag = 'input window, operand 0, single buffered']
    #allocation3 [shape = 's32[1]{0}', space=sflag, size = 0x4, scoped, tag = 'scoped memory for regular_bottleneck_packed.1']
    #allocation4 [shape = 's32[1]{0}', space=sflag, size = 0x4, scoped, tag = 'scoped memory for regular_bottleneck_packed.1']
    #allocation5 [shape = 's32[1]{0}', space=sflag, size = 0x4, scoped, tag = 'scoped memory for regular_bottleneck_packed.1']
    #allocation6 [shape = 'u8[16384]{0}', space=vmem, size = 0x4000, scoped, tag = 'input window, operand 1, single buffered']
    #allocation7 [shape = 'u8[32768]{0}', space=vmem, size = 0x8000, scoped, tag = 'input window, operand 2, single buffered']
    #allocation8 [shape = 's32[1]{0}', space=sflag, size = 0x4, scoped, tag = 'scoped memory for regular_bottleneck_packed.1']
    #allocation9 [shape = 'u8[98304]{0}', space=vmem, size = 0x18000, scoped, tag = 'input window, operand 4, single buffered']
    #allocation10 [shape = 'u8[32768]{0}', space=vmem, size = 0x8000, scoped, tag = 'input window, operand 6, single buffered']
    #allocation11 [shape = 's32[1]{0}', space=sflag, size = 0x4, scoped, tag = 'scoped memory for regular_bottleneck_packed.1']
    #allocation12 [shape = 'u8[16384]{0}', space=vmem, size = 0x4000, scoped, tag = 'output window, operand 0, single buffered']
    %13 = vsyncpa [#allocation5], 0
    %14 = vsyncpa [#allocation3], 0
    %15 = vsyncpa [#allocation8], 0
    %16 = vsyncpa [#allocation11], 0
    %17 = vsyncpa [#allocation4], 0
    // Predicated region
    $region2: #{regular_bottleneck_packed.1} parent=1 // pred_check
      _
    $region3: #{regular_bottleneck_packed.1} parent=1 // pred_check_branch
      %19 = sbr.rel (0) target = $region5
    $region4: #{regular_bottleneck_packed.1} parent=1 // pred_region
      %s21 = ssub.s32 16, 16
      %22 = vsyncadd [#allocation5], %s21
      %s24 = sshll.u32 %s0, 4
      %s25 = int_to_ptr.vmem [resolvable:$true] %s24
      %27 = dma.vmem_to_smem %s25, 16, [#allocation2], [#allocation5]
    $region5: #{regular_bottleneck_packed.1} parent=1 // pred_fallthru
      _
    // Predicated region
    $region6: #{regular_bottleneck_packed.1} parent=1 // pred_check
      _
    $region7: #{regular_bottleneck_packed.1} parent=1 // pred_check_branch
      %29 = sbr.rel (0) target = $region9
    $region8: #{regular_bottleneck_packed.1} parent=1 // pred_region
      %s31 = ssub.s32 512, 512
      %32 = vsyncadd [#allocation3], %s31
      %s33 = sshll.u32 [#allocation6], 4
      %s34 = int_to_ptr.vmem [resolvable:$true] %s33
      %39 = dma.hbm_to_vmem [thread:$0]  %s1, 512, %s34, [#allocation3], 128, 128, 8
    $region9: #{regular_bottleneck_packed.1} parent=1 // pred_fallthru
      _
    // Predicated region
    $region10: #{regular_bottleneck_packed.1} parent=1 // pred_check
      _
    $region11: #{regular_bottleneck_packed.1} parent=1 // pred_check_branch
      %41 = sbr.rel (0) target = $region13
    $region12: #{regular_bottleneck_packed.1} parent=1 // pred_region
      %s43 = ssub.s32 1024, 1024
      %44 = vsyncadd [#allocation8], %s43
      %s45 = sshll.u32 [#allocation7], 4
      %s46 = int_to_ptr.vmem [resolvable:$true] %s45
      %51 = dma.hbm_to_vmem [thread:$0]  %s2, 1024, %s46, [#allocation8], 64, 64, 4
    $region13: #{regular_bottleneck_packed.1} parent=1 // pred_fallthru
      _
    // Predicated region
    $region14: #{regular_bottleneck_packed.1} parent=1 // pred_check
      _
    $region15: #{regular_bottleneck_packed.1} parent=1 // pred_check_branch
      %53 = sbr.rel (0) target = $region17
    $region16: #{regular_bottleneck_packed.1} parent=1 // pred_region
      _
    $region17: #{regular_bottleneck_packed.1} parent=1 // pred_fallthru
      _
    // Predicated region
    $region18: #{regular_bottleneck_packed.1} parent=1 // pred_check
      _
    $region19: #{regular_bottleneck_packed.1} parent=1 // pred_check_branch
      %55 = sbr.rel (0) target = $region21
    $region20: #{regular_bottleneck_packed.1} parent=1 // pred_region
      %s57 = ssub.s32 3072, 3072
      %58 = vsyncadd [#allocation8], %s57
      %s59 = sshll.u32 [#allocation9], 4
      %s60 = int_to_ptr.vmem [resolvable:$true] %s59
      %65 = dma.hbm_to_vmem [thread:$0]  %s4, 3072, %s60, [#allocation8], 192, 192, 12
    $region21: #{regular_bottleneck_packed.1} parent=1 // pred_fallthru
      _
    // Predicated region
    $region22: #{regular_bottleneck_packed.1} parent=1 // pred_check
      _
    $region23: #{regular_bottleneck_packed.1} parent=1 // pred_check_branch
      %67 = sbr.rel (0) target = $region25
    $region24: #{regular_bottleneck_packed.1} parent=1 // pred_region
      _
    $region25: #{regular_bottleneck_packed.1} parent=1 // pred_fallthru
      _
    // Predicated region
    $region26: #{regular_bottleneck_packed.1} parent=1 // pred_check
      _
    $region27: #{regular_bottleneck_packed.1} parent=1 // pred_check_branch
      %69 = sbr.rel (0) target = $region29
    $region28: #{regular_bottleneck_packed.1} parent=1 // pred_region
      %s71 = ssub.s32 1024, 1024
      %72 = vsyncadd [#allocation11], %s71
      %s73 = sshll.u32 [#allocation10], 4
      %s74 = int_to_ptr.vmem [resolvable:$true] %s73
      %79 = dma.hbm_to_vmem [thread:$0]  %s6, 1024, %s74, [#allocation11], 64, 64, 4
    $region29: #{regular_bottleneck_packed.1} parent=1 // pred_fallthru
      _
    // Predicated region
    $region30: #{regular_bottleneck_packed.1} parent=1 // pred_check
      _
    $region31: #{regular_bottleneck_packed.1} parent=1 // pred_check_branch
      %81 = sbr.rel (0) target = $region33
    $region32: #{regular_bottleneck_packed.1} parent=1 // pred_region
      _
    $region33: #{regular_bottleneck_packed.1} parent=1 // pred_fallthru
      _
    // Predicated region
    $region34: #{regular_bottleneck_packed.1} parent=1 // pred_check
      _
    $region35: #{regular_bottleneck_packed.1} parent=1 // pred_check_branch
      %83 = sbr.rel (0) target = $region37
    $region36: #{regular_bottleneck_packed.1} parent=1 // pred_region
      %84 = dma.done [#allocation5], 16
    $region37: #{regular_bottleneck_packed.1} parent=1 // pred_fallthru
      _
    // Predicated region
    $region38: #{regular_bottleneck_packed.1} parent=1 // pred_check
      _
    $region39: #{regular_bottleneck_packed.1} parent=1 // pred_check_branch
      %86 = sbr.rel (0) target = $region41
    $region40: #{regular_bottleneck_packed.1} parent=1 // pred_region
      %87 = dma.done [#allocation3], 512
    $region41: #{regular_bottleneck_packed.1} parent=1 // pred_fallthru
      _
    // Predicated region
    $region42: #{regular_bottleneck_packed.1} parent=1 // pred_check
      _
    $region43: #{regular_bottleneck_packed.1} parent=1 // pred_check_branch
      %89 = sbr.rel (0) target = $region45
    $region44: #{regular_bottleneck_packed.1} parent=1 // pred_region
      %90 = dma.done [#allocation8], 1024
    $region45: #{regular_bottleneck_packed.1} parent=1 // pred_fallthru
      _
    // Predicated region
    $region46: #{regular_bottleneck_packed.1} parent=1 // pred_check
      _
    $region47: #{regular_bottleneck_packed.1} parent=1 // pred_check_branch
      %92 = sbr.rel (0) target = $region49
    $region48: #{regular_bottleneck_packed.1} parent=1 // pred_region
      %93 = dma.done [#allocation8], 3072
    $region49: #{regular_bottleneck_packed.1} parent=1 // pred_fallthru
      _
    // Predicated region
    $region50: #{regular_bottleneck_packed.1} parent=1 // pred_check
      _
    $region51: #{regular_bottleneck_packed.1} parent=1 // pred_check_branch
      %95 = sbr.rel (0) target = $region53
    $region52: #{regular_bottleneck_packed.1} parent=1 // pred_region
      %96 = dma.done [#allocation11], 1024
    $region53: #{regular_bottleneck_packed.1} parent=1 // pred_fallthru
      _
    %97 = sfence
    %s99 = sld [smem:[#allocation2]]
    %s100 = sld [smem:[#allocation2 + $0x1]]
    %s101 = sld [smem:[#allocation2 + $0x2]]
    %v102 = vld [vmem:[#allocation6] sm:$0xff]
    %v103 = vld [vmem:[#allocation6 + $0x8] sm:$0xff]
    %v104 = vld [vmem:[#allocation6 + $0x10] sm:$0xff]
    %v105 = vld [vmem:[#allocation6 + $0x18] sm:$0xff]
    %v106 = vpack.c.bf16 %v103, %v102
    %v107 = vpack.c.bf16 %v105, %v104
    %v108 = vld [vmem:[#allocation7] sm:$0xf]
    %v109 = vld [vmem:[#allocation7 + $0x4] sm:$0xf]
    %v110 = vld [vmem:[#allocation7 + $0x8] sm:$0xf]
    %v111 = vld [vmem:[#allocation7 + $0xc] sm:$0xf]
    %v112 = vld [vmem:[#allocation7 + $0x10] sm:$0xf]
    %v113 = vld [vmem:[#allocation7 + $0x14] sm:$0xf]
    %v114 = vld [vmem:[#allocation7 + $0x18] sm:$0xf]
    %v115 = vld [vmem:[#allocation7 + $0x1c] sm:$0xf]
    %v116 = vld [vmem:[#allocation7 + $0x20] sm:$0xf]
    %v117 = vld [vmem:[#allocation7 + $0x24] sm:$0xf]
    %v118 = vld [vmem:[#allocation7 + $0x28] sm:$0xf]
    %v119 = vld [vmem:[#allocation7 + $0x2c] sm:$0xf]
    %v120 = vld [vmem:[#allocation7 + $0x30] sm:$0xf]
    %v121 = vld [vmem:[#allocation7 + $0x34] sm:$0xf]
    %v122 = vld [vmem:[#allocation7 + $0x38] sm:$0xf]
    %v123 = vld [vmem:[#allocation7 + $0x3c] sm:$0xf]
    %v124 = vld [vmem:[%s3] sm:$0x1]
    %v126 = vlaneseq
    %v127 = vshrl.u32 %v126, 7
    %v128 = vsub.s32 0, %v127
    %v129 = vrot.slane %v124, %v128
    %v147 = vunpack.c.l.b16 %v108
    %v148 = vunpack.c.l.b16 %v109
    %v149 = vunpack.c.l.b16 %v110
    %v150 = vunpack.c.l.b16 %v111
    %v151 = vunpack.c.l.b16 %v112
    %v152 = vunpack.c.l.b16 %v113
    %v153 = vunpack.c.l.b16 %v114
    %v154 = vunpack.c.l.b16 %v115
    %v155 = vunpack.c.l.b16 %v116
    %v156 = vunpack.c.l.b16 %v117
    %v157 = vunpack.c.l.b16 %v118
    %v158 = vunpack.c.l.b16 %v119
    %v159 = vunpack.c.l.b16 %v120
    %v160 = vunpack.c.l.b16 %v121
    %v161 = vunpack.c.l.b16 %v122
    %v162 = vunpack.c.l.b16 %v123
    %v163 = vpack.c.b16 %v148, %v147
    %v164 = vpack.c.b16 %v150, %v149
    %v165 = vpack.c.b16 %v152, %v151
    %v166 = vpack.c.b16 %v154, %v153
    %v167 = vpack.c.b16 %v156, %v155
    %v168 = vpack.c.b16 %v158, %v157
    %v169 = vpack.c.b16 %v160, %v159
    %v170 = vpack.c.b16 %v162, %v161
    %179 = vmatprep.subr.bf16.mxu0 0
    %180 = vmatpush1.bf16.msra.mxu0 %v170
    %181 = vmatprep.subr.bf16.mxu0 0
    %182 = vmatpush1.bf16.msra.mxu0 %v169
    %183 = vmatprep.subr.bf16.mxu0 0
    %184 = vmatpush1.bf16.msra.mxu0 %v168
    %185 = vmatprep.subr.bf16.mxu0 0
    %186 = vmatpush1.bf16.msra.mxu0 %v167
    %187 = vmatprep.subr.bf16.mxu0 0
    %188 = vmatpush1.bf16.msra.mxu0 %v166
    %189 = vmatprep.subr.bf16.mxu0 0
    %190 = vmatpush1.bf16.msra.mxu0 %v165
    %191 = vmatprep.subr.bf16.mxu0 0
    %192 = vmatpush1.bf16.msra.mxu0 %v164
    %193 = vmatprep.subr.bf16.mxu0 0
    %194 = vmatpush1.bf16.msra.mxu0 %v163
    %195 = vmatprep.subr.bf16.mxu0 0
    %196 = vmatpush2.bf16.msra.mxu0 0
    %197 = vmatprep.subr.bf16.mxu0 0
    %198 = vmatpush2.bf16.msra.mxu0 0
    %199 = vmatprep.subr.bf16.mxu0 0
    %200 = vmatpush2.bf16.msra.mxu0 0
    %201 = vmatprep.subr.bf16.mxu0 0
    %202 = vmatpush2.bf16.msra.mxu0 0
    %203 = vmatprep.subr.bf16.mxu0 0
    %204 = vmatpush2.bf16.msra.mxu0 0
    %205 = vmatprep.subr.bf16.mxu0 0
    %206 = vmatpush2.bf16.msra.mxu0 0
    %207 = vmatprep.subr.bf16.mxu0 0
    %208 = vmatpush2.bf16.msra.mxu0 0
    %209 = vmatprep.subr.bf16.mxu0 0
    %210 = vmatpush2.bf16.msra.mxu0 0
    %211 = vmatprep.mubr.bf16.mxu0 0
    %212 = vmatmul.mubr.bf16.gmra.mxu0 %v106
    %v213 = vpop.f32.mrf.mxu0
    %v214 = vadd.f32 %v129, %v213
    %v215 = vpop.f32.mrf.mxu0
    %v216 = vpop.f32.mrf.mxu0
    %v217 = vadd.f32 %v129, %v216
    %v218 = vpop.f32.mrf.mxu0
    %219 = vmatprep.mubr.bf16.mxu0 0
    %220 = vmatmul.mubr.bf16.gmra.mxu0 %v107
    %v221 = vpop.f32.mrf.mxu0
    %v222 = vadd.f32 %v129, %v221
    %v223 = vpop.f32.mrf.mxu0
    %v224 = vpop.f32.mrf.mxu0
    %v225 = vadd.f32 %v129, %v224
    %v226 = vpop.f32.mrf.mxu0
    %227 = vdwg.mxu0
    %vm228 = vcmp.ge.f32.partialorder %v214, 0.0
    %vm229 = vcmp.ge.f32.partialorder %v217, 0.0
    %vm230 = vcmp.ge.f32.partialorder %v222, 0.0
    %vm231 = vcmp.ge.f32.partialorder %v225, 0.0
    %v232 = vstv %s99
    %v233 = vmul.f32 %v232, %v214
    %v234 = vmul.f32 %v232, %v217
    %v235 = vmul.f32 %v232, %v222
    %v236 = vmul.f32 %v232, %v225
    %v237 = vsel %vm228, %v214, %v233
    %v238 = vsel %vm229, %v217, %v234
    %v239 = vsel %vm230, %v222, %v235
    %v240 = vsel %vm231, %v225, %v236
    %v241 = vpack.c.bf16 %v238, %v237
    %v242 = vpack.c.bf16 %v240, %v239
    %v243 = vld [vmem:[#allocation9] sm:$0xff]
    %v244 = vld [vmem:[#allocation9 + $0x8] sm:$0xf]
    %v245 = vld [vmem:[#allocation9 + $0xc] sm:$0xff]
    %v246 = vld [vmem:[#allocation9 + $0x14] sm:$0xf]
    %v247 = vld [vmem:[#allocation9 + $0x18] sm:$0xff]
    %v248 = vld [vmem:[#allocation9 + $0x20] sm:$0xf]
    %v249 = vld [vmem:[#allocation9 + $0x24] sm:$0xff]
    %v250 = vld [vmem:[#allocation9 + $0x2c] sm:$0xf]
    %v251 = vld [vmem:[#allocation9 + $0x30] sm:$0xff]
    %v252 = vld [vmem:[#allocation9 + $0x38] sm:$0xf]
    %v253 = vld [vmem:[#allocation9 + $0x3c] sm:$0xff]
    %v254 = vld [vmem:[#allocation9 + $0x44] sm:$0xf]
    %v255 = vld [vmem:[#allocation9 + $0x48] sm:$0xff]
    %v256 = vld [vmem:[#allocation9 + $0x50] sm:$0xf]
    %v257 = vld [vmem:[#allocation9 + $0x54] sm:$0xff]
    %v258 = vld [vmem:[#allocation9 + $0x5c] sm:$0xf]
    %v259 = vld [vmem:[#allocation9 + $0x60] sm:$0xff]
    %v260 = vld [vmem:[#allocation9 + $0x68] sm:$0xf]
    %v261 = vld [vmem:[#allocation9 + $0x6c] sm:$0xff]
    %v262 = vld [vmem:[#allocation9 + $0x74] sm:$0xf]
    %v263 = vld [vmem:[#allocation9 + $0x78] sm:$0xff]
    %v264 = vld [vmem:[#allocation9 + $0x80] sm:$0xf]
    %v265 = vld [vmem:[#allocation9 + $0x84] sm:$0xff]
    %v266 = vld [vmem:[#allocation9 + $0x8c] sm:$0xf]
    %v267 = vld [vmem:[#allocation9 + $0x90] sm:$0xff]
    %v268 = vld [vmem:[#allocation9 + $0x98] sm:$0xf]
    %v269 = vld [vmem:[#allocation9 + $0x9c] sm:$0xff]
    %v270 = vld [vmem:[#allocation9 + $0xa4] sm:$0xf]
    %v271 = vld [vmem:[#allocation9 + $0xa8] sm:$0xff]
    %v272 = vld [vmem:[#allocation9 + $0xb0] sm:$0xf]
    %v273 = vld [vmem:[#allocation9 + $0xb4] sm:$0xff]
    %v274 = vld [vmem:[#allocation9 + $0xbc] sm:$0xf]
    %v307 = vunpack.c.l.b16 %v243
    %v308 = vunpack.c.h.b16 %v243
    %v309 = vunpack.c.l.b16 %v244
    %v310 = vunpack.c.l.b16 %v245
    %v311 = vunpack.c.h.b16 %v245
    %v312 = vunpack.c.l.b16 %v246
    %v313 = vunpack.c.l.b16 %v247
    %v314 = vunpack.c.h.b16 %v247
    %v315 = vunpack.c.l.b16 %v248
    %v316 = vunpack.c.l.b16 %v249
    %v317 = vunpack.c.h.b16 %v249
    %v318 = vunpack.c.l.b16 %v250
    %v319 = vunpack.c.l.b16 %v251
    %v320 = vunpack.c.h.b16 %v251
    %v321 = vunpack.c.l.b16 %v252
    %v322 = vunpack.c.l.b16 %v253
    %v323 = vunpack.c.h.b16 %v253
    %v324 = vunpack.c.l.b16 %v254
    %v325 = vunpack.c.l.b16 %v255
    %v326 = vunpack.c.h.b16 %v255
    %v327 = vunpack.c.l.b16 %v256
    %v328 = vunpack.c.l.b16 %v257
    %v329 = vunpack.c.h.b16 %v257
    %v330 = vunpack.c.l.b16 %v258
    %v331 = vunpack.c.l.b16 %v259
    %v332 = vunpack.c.h.b16 %v259
    %v333 = vunpack.c.l.b16 %v260
    %v334 = vunpack.c.l.b16 %v261
    %v335 = vunpack.c.h.b16 %v261
    %v336 = vunpack.c.l.b16 %v262
    %v337 = vunpack.c.l.b16 %v263
    %v338 = vunpack.c.h.b16 %v263
    %v339 = vunpack.c.l.b16 %v264
    %v340 = vunpack.c.l.b16 %v265
    %v341 = vunpack.c.h.b16 %v265
    %v342 = vunpack.c.l.b16 %v266
    %v343 = vunpack.c.l.b16 %v267
    %v344 = vunpack.c.h.b16 %v267
    %v345 = vunpack.c.l.b16 %v268
    %v346 = vunpack.c.l.b16 %v269
    %v347 = vunpack.c.h.b16 %v269
    %v348 = vunpack.c.l.b16 %v270
    %v349 = vunpack.c.l.b16 %v271
    %v350 = vunpack.c.h.b16 %v271
    %v351 = vunpack.c.l.b16 %v272
    %v352 = vunpack.c.l.b16 %v273
    %v353 = vunpack.c.h.b16 %v273
    %v354 = vunpack.c.l.b16 %v274
    %v355 = vpack.c.b16 %v310, %v307
    %v356 = vpack.c.b16 %v311, %v308
    %v357 = vpack.c.b16 %v312, %v309
    %v358 = vpack.c.b16 %v316, %v313
    %v359 = vpack.c.b16 %v317, %v314
    %v360 = vpack.c.b16 %v318, %v315
    %v361 = vpack.c.b16 %v322, %v319
    %v362 = vpack.c.b16 %v323, %v320
    %v363 = vpack.c.b16 %v324, %v321
    %v364 = vpack.c.b16 %v328, %v325
    %v365 = vpack.c.b16 %v329, %v326
    %v366 = vpack.c.b16 %v330, %v327
    %v367 = vpack.c.b16 %v334, %v331
    %v368 = vpack.c.b16 %v335, %v332
    %v369 = vpack.c.b16 %v336, %v333
    %v370 = vpack.c.b16 %v340, %v337
    %v371 = vpack.c.b16 %v341, %v338
    %v372 = vpack.c.b16 %v342, %v339
    %v373 = vpack.c.b16 %v346, %v343
    %v374 = vpack.c.b16 %v347, %v344
    %v375 = vpack.c.b16 %v348, %v345
    %v376 = vpack.c.b16 %v352, %v349
    %v377 = vpack.c.b16 %v353, %v350
    %v378 = vpack.c.b16 %v354, %v351
    %403 = vmatprep.subr.bf16.mxu0 %v377
    %404 = vmatpush1.bf16.msra.mxu0 %v376
    %405 = vmatprep.subr.bf16.mxu0 %v374
    %406 = vmatpush1.bf16.msra.mxu0 %v373
    %407 = vmatprep.subr.bf16.mxu0 %v371
    %408 = vmatpush1.bf16.msra.mxu0 %v370
    %409 = vmatprep.subr.bf16.mxu0 %v368
    %410 = vmatpush1.bf16.msra.mxu0 %v367
    %411 = vmatprep.subr.bf16.mxu0 %v365
    %412 = vmatpush1.bf16.msra.mxu0 %v364
    %413 = vmatprep.subr.bf16.mxu0 %v362
    %414 = vmatpush1.bf16.msra.mxu0 %v361
    %415 = vmatprep.subr.bf16.mxu0 %v359
    %416 = vmatpush1.bf16.msra.mxu0 %v358
    %417 = vmatprep.subr.bf16.mxu0 %v356
    %418 = vmatpush1.bf16.msra.mxu0 %v355
    %419 = vmatprep.subr.bf16.mxu0 0
    %420 = vmatpush2.bf16.msra.mxu0 0
    %421 = vmatprep.subr.bf16.mxu0 0
    %422 = vmatpush2.bf16.msra.mxu0 0
    %423 = vmatprep.subr.bf16.mxu0 0
    %424 = vmatpush2.bf16.msra.mxu0 0
    %425 = vmatprep.subr.bf16.mxu0 0
    %426 = vmatpush2.bf16.msra.mxu0 0
    %427 = vmatprep.subr.bf16.mxu0 0
    %428 = vmatpush2.bf16.msra.mxu0 0
    %429 = vmatprep.subr.bf16.mxu0 0
    %430 = vmatpush2.bf16.msra.mxu0 0
    %431 = vmatprep.subr.bf16.mxu0 0
    %432 = vmatpush2.bf16.msra.mxu0 0
    %433 = vmatprep.subr.bf16.mxu0 0
    %434 = vmatpush2.bf16.msra.mxu0 0
    %435 = vmatprep.mubr.bf16.mxu0 0
    %436 = vmatmul.mubr.bf16.gmra.mxu0 %v241
    %v437 = vpop.f32.mrf.mxu0
    %v438 = vadd.f32 0.0, %v437
    %v439 = vpop.f32.mrf.mxu0
    %v440 = vadd.f32 0.0, %v439
    %v441 = vpop.f32.mrf.mxu0
    %v442 = vadd.f32 0.0, %v441
    %v443 = vpop.f32.mrf.mxu0
    %v444 = vadd.f32 0.0, %v443
    %445 = vmatprep.mubr.bf16.mxu0 0
    %446 = vmatmul.mubr.bf16.gmra.mxu0 %v242
    %v447 = vpop.f32.mrf.mxu0
    %v448 = vadd.f32 0.0, %v447
    %v449 = vpop.f32.mrf.mxu0
    %v450 = vadd.f32 0.0, %v449
    %v451 = vpop.f32.mrf.mxu0
    %v452 = vadd.f32 0.0, %v451
    %v453 = vpop.f32.mrf.mxu0
    %v454 = vadd.f32 0.0, %v453
    %455 = vdwg.mxu0
    %456 = vmatprep.subr.bf16.mxu0 0
    %457 = vmatpush1.bf16.msra.mxu0 %v378
    %458 = vmatprep.subr.bf16.mxu0 0
    %459 = vmatpush1.bf16.msra.mxu0 %v375
    %460 = vmatprep.subr.bf16.mxu0 0
    %461 = vmatpush1.bf16.msra.mxu0 %v372
    %462 = vmatprep.subr.bf16.mxu0 0
    %463 = vmatpush1.bf16.msra.mxu0 %v369
    %464 = vmatprep.subr.bf16.mxu0 0
    %465 = vmatpush1.bf16.msra.mxu0 %v366
    %466 = vmatprep.subr.bf16.mxu0 0
    %467 = vmatpush1.bf16.msra.mxu0 %v363
    %468 = vmatprep.subr.bf16.mxu0 0
    %469 = vmatpush1.bf16.msra.mxu0 %v360
    %470 = vmatprep.subr.bf16.mxu0 0
    %471 = vmatpush1.bf16.msra.mxu0 %v357
    %472 = vmatprep.subr.bf16.mxu0 0
    %473 = vmatpush2.bf16.msra.mxu0 0
    %474 = vmatprep.subr.bf16.mxu0 0
    %475 = vmatpush2.bf16.msra.mxu0 0
    %476 = vmatprep.subr.bf16.mxu0 0
    %477 = vmatpush2.bf16.msra.mxu0 0
    %478 = vmatprep.subr.bf16.mxu0 0
    %479 = vmatpush2.bf16.msra.mxu0 0
    %480 = vmatprep.subr.bf16.mxu0 0
    %481 = vmatpush2.bf16.msra.mxu0 0
    %482 = vmatprep.subr.bf16.mxu0 0
    %483 = vmatpush2.bf16.msra.mxu0 0
    %484 = vmatprep.subr.bf16.mxu0 0
    %485 = vmatpush2.bf16.msra.mxu0 0
    %486 = vmatprep.subr.bf16.mxu0 0
    %487 = vmatpush2.bf16.msra.mxu0 0
    %488 = vmatprep.mubr.bf16.mxu0 0
    %489 = vmatmul.mubr.bf16.gmra.mxu0 %v241
    %v490 = vpop.f32.mrf.mxu0
    %v491 = vadd.f32 0.0, %v490
    %v492 = vpop.f32.mrf.mxu0
    %v493 = vpop.f32.mrf.mxu0
    %v494 = vadd.f32 0.0, %v493
    %v495 = vpop.f32.mrf.mxu0
    %496 = vmatprep.mubr.bf16.mxu0 0
    %497 = vmatmul.mubr.bf16.gmra.mxu0 %v242
    %v498 = vpop.f32.mrf.mxu0
    %v499 = vadd.f32 0.0, %v498
    %v500 = vpop.f32.mrf.mxu0
    %v501 = vpop.f32.mrf.mxu0
    %v502 = vadd.f32 0.0, %v501
    %v503 = vpop.f32.mrf.mxu0
    %504 = vdwg.mxu0
    %v505 = vlaneseq
    %v506 = vshrl.u32 %v505, 7
    %v507 = vadd.s32 %v506, 8
    %v508 = vadd.s32 %v506, 16
    %v509 = vadd.s32 %v506, 24
    %vm510 = vcmp.lt.s32.totalorder %v506, 0
    %v511 = vsub.s32 0, %v506
    %v512 = vsel %vm510, %v511, %v506
    %v513 = vshrl.u32 %v512, 4
    %v514 = vand.u32 %v512, 15
    %v515 = vsub.s32 0, %v514
    %v516 = vsel %vm510, %v515, %v514
    %vm517 = vcmp.lt.s32.totalorder %v507, 0
    %v518 = vsub.s32 0, %v507
    %v519 = vsel %vm517, %v518, %v507
    %v520 = vshrl.u32 %v519, 4
    %v521 = vand.u32 %v519, 15
    %v522 = vsub.s32 0, %v521
    %v523 = vsel %vm517, %v522, %v521
    %vm524 = vcmp.lt.s32.totalorder %v508, 0
    %v525 = vsub.s32 0, %v508
    %v526 = vsel %vm524, %v525, %v508
    %v527 = vshrl.u32 %v526, 4
    %v528 = vand.u32 %v526, 15
    %v529 = vsub.s32 0, %v528
    %v530 = vsel %vm524, %v529, %v528
    %vm531 = vcmp.lt.s32.totalorder %v509, 0
    %v532 = vsub.s32 0, %v509
    %v533 = vsel %vm531, %v532, %v509
    %v534 = vshrl.u32 %v533, 4
    %v535 = vand.u32 %v533, 15
    %v536 = vsub.s32 0, %v535
    %v537 = vsel %vm531, %v536, %v535
    %vm538 = vcmp.ne.s32.totalorder %v516, 0
    %vm539 = vcmp.ne.s32.totalorder %v523, 0
    %vm540 = vcmp.ne.s32.totalorder %v530, 0
    %vm541 = vcmp.ne.s32.totalorder %v537, 0
    %vm542 = vcmp.lt.s32.totalorder %v516, 0
    %vm543 = vcmp.lt.s32.totalorder %v523, 0
    %vm544 = vcmp.lt.s32.totalorder %v530, 0
    %vm545 = vcmp.lt.s32.totalorder %v537, 0
    %vm546 = vmand %vm542, %vm538
    %vm547 = vmand %vm543, %vm539
    %vm548 = vmand %vm544, %vm540
    %vm549 = vmand %vm545, %vm541
    %v550 = vadd.s32 %v516, 16
    %v551 = vadd.s32 %v523, 16
    %v552 = vadd.s32 %v530, 16
    %v553 = vadd.s32 %v537, 16
    %v554 = vsel %vm546, %v550, %v516
    %v555 = vsel %vm547, %v551, %v523
    %v556 = vsel %vm548, %v552, %v530
    %v557 = vsel %vm549, %v553, %v537
    %vm558 = vcmp.eq.s32.totalorder %v554, 0
    %vm559 = vcmp.eq.s32.totalorder %v555, 0
    %vm560 = vcmp.eq.s32.totalorder %v556, 0
    %vm561 = vcmp.eq.s32.totalorder %v557, 0
    %v562 = vrot.slane %v438, 7
    %v563 = vrot.slane %v442, 7
    %v564 = vrot.slane %v448, 7
    %v565 = vrot.slane %v452, 7
    %vm566 = vcmp.lt.s32.totalorder %v506, 1
    %v567 = vsel %vm566, %v564, %v565
    %v568 = vsel %vm566, %v563, %v564
    %v569 = vsel %vm566, %v562, %v563
    %v570 = vsel %vm566, %v565, %v562
    %v571 = vsel %vm558, 0.0, %v570
    %v572 = vsel %vm559, 0.0, %v569
    %v573 = vsel %vm560, 0.0, %v568
    %v574 = vsel %vm561, 0.0, %v567
    %vm575 = vcmp.eq.s32.totalorder %v554, 15
    %vm576 = vcmp.eq.s32.totalorder %v555, 15
    %vm577 = vcmp.eq.s32.totalorder %v556, 15
    %vm578 = vcmp.eq.s32.totalorder %v557, 15
    %v579 = vrot.slane %v491, 1
    %v580 = vrot.slane %v494, 1
    %v581 = vrot.slane %v499, 1
    %v582 = vrot.slane %v502, 1
    %vm583 = vcmp.lt.s32.totalorder %v506, 7
    %v584 = vsel %vm583, %v581, %v582
    %v585 = vsel %vm583, %v580, %v581
    %v586 = vsel %vm583, %v579, %v580
    %v587 = vsel %vm583, %v582, %v579
    %v588 = vsel %vm575, 0.0, %v586
    %v589 = vsel %vm576, 0.0, %v585
    %v590 = vsel %vm577, 0.0, %v584
    %v591 = vsel %vm578, 0.0, %v587
    %v592 = vadd.f32 %v571, %v440
    %v593 = vadd.f32 %v572, %v444
    %v594 = vadd.f32 %v573, %v450
    %v595 = vadd.f32 %v574, %v454
    %v596 = vadd.f32 %v592, %v588
    %v597 = vadd.f32 %v593, %v589
    %v598 = vadd.f32 %v594, %v590
    %v599 = vadd.f32 %v595, %v591
    %v600 = vld [vmem:[%s5] sm:$0x1]
    %v602 = vlaneseq
    %v603 = vshrl.u32 %v602, 7
    %v604 = vsub.s32 0, %v603
    %v605 = vrot.slane %v600, %v604
    %v607 = vadd.f32 %v596, %v605
    %v608 = vadd.f32 %v597, %v605
    %v609 = vadd.f32 %v598, %v605
    %v610 = vadd.f32 %v599, %v605
    %vm611 = vcmp.ge.f32.partialorder %v607, 0.0
    %vm612 = vcmp.ge.f32.partialorder %v608, 0.0
    %vm613 = vcmp.ge.f32.partialorder %v609, 0.0
    %vm614 = vcmp.ge.f32.partialorder %v610, 0.0
    %v615 = vstv %s100
    %v616 = vmul.f32 %v615, %v607
    %v617 = vmul.f32 %v615, %v608
    %v618 = vmul.f32 %v615, %v609
    %v619 = vmul.f32 %v615, %v610
    %v620 = vsel %vm611, %v607, %v616
    %v621 = vsel %vm612, %v608, %v617
    %v622 = vsel %vm613, %v609, %v618
    %v623 = vsel %vm614, %v610, %v619
    %v624 = vpack.c.bf16 %v621, %v620
    %v625 = vpack.c.bf16 %v623, %v622
    %v626 = vld [vmem:[#allocation10] sm:$0xf]
    %v627 = vld [vmem:[#allocation10 + $0x4] sm:$0xf]
    %v628 = vld [vmem:[#allocation10 + $0x8] sm:$0xf]
    %v629 = vld [vmem:[#allocation10 + $0xc] sm:$0xf]
    %v630 = vld [vmem:[#allocation10 + $0x10] sm:$0xf]
    %v631 = vld [vmem:[#allocation10 + $0x14] sm:$0xf]
    %v632 = vld [vmem:[#allocation10 + $0x18] sm:$0xf]
    %v633 = vld [vmem:[#allocation10 + $0x1c] sm:$0xf]
    %v634 = vld [vmem:[#allocation10 + $0x20] sm:$0xf]
    %v635 = vld [vmem:[#allocation10 + $0x24] sm:$0xf]
    %v636 = vld [vmem:[#allocation10 + $0x28] sm:$0xf]
    %v637 = vld [vmem:[#allocation10 + $0x2c] sm:$0xf]
    %v638 = vld [vmem:[#allocation10 + $0x30] sm:$0xf]
    %v639 = vld [vmem:[#allocation10 + $0x34] sm:$0xf]
    %v640 = vld [vmem:[#allocation10 + $0x38] sm:$0xf]
    %v641 = vld [vmem:[#allocation10 + $0x3c] sm:$0xf]
    %v642 = vld [vmem:[%s7] sm:$0x1]
    %v644 = vlaneseq
    %v645 = vshrl.u32 %v644, 7
    %v646 = vsub.s32 0, %v645
    %v647 = vrot.slane %v642, %v646
    %v665 = vunpack.c.l.b16 %v626
    %v666 = vunpack.c.l.b16 %v627
    %v667 = vunpack.c.l.b16 %v628
    %v668 = vunpack.c.l.b16 %v629
    %v669 = vunpack.c.l.b16 %v630
    %v670 = vunpack.c.l.b16 %v631
    %v671 = vunpack.c.l.b16 %v632
    %v672 = vunpack.c.l.b16 %v633
    %v673 = vunpack.c.l.b16 %v634
    %v674 = vunpack.c.l.b16 %v635
    %v675 = vunpack.c.l.b16 %v636
    %v676 = vunpack.c.l.b16 %v637
    %v677 = vunpack.c.l.b16 %v638
    %v678 = vunpack.c.l.b16 %v639
    %v679 = vunpack.c.l.b16 %v640
    %v680 = vunpack.c.l.b16 %v641
    %v681 = vpack.c.b16 %v666, %v665
    %v682 = vpack.c.b16 %v668, %v667
    %v683 = vpack.c.b16 %v670, %v669
    %v684 = vpack.c.b16 %v672, %v671
    %v685 = vpack.c.b16 %v674, %v673
    %v686 = vpack.c.b16 %v676, %v675
    %v687 = vpack.c.b16 %v678, %v677
    %v688 = vpack.c.b16 %v680, %v679
    %697 = vmatprep.subr.bf16.mxu0 0
    %698 = vmatpush1.bf16.msra.mxu0 %v688
    %699 = vmatprep.subr.bf16.mxu0 0
    %700 = vmatpush1.bf16.msra.mxu0 %v687
    %701 = vmatprep.subr.bf16.mxu0 0
    %702 = vmatpush1.bf16.msra.mxu0 %v686
    %703 = vmatprep.subr.bf16.mxu0 0
    %704 = vmatpush1.bf16.msra.mxu0 %v685
    %705 = vmatprep.subr.bf16.mxu0 0
    %706 = vmatpush1.bf16.msra.mxu0 %v684
    %707 = vmatprep.subr.bf16.mxu0 0
    %708 = vmatpush1.bf16.msra.mxu0 %v683
    %709 = vmatprep.subr.bf16.mxu0 0
    %710 = vmatpush1.bf16.msra.mxu0 %v682
    %711 = vmatprep.subr.bf16.mxu0 0
    %712 = vmatpush1.bf16.msra.mxu0 %v681
    %713 = vmatprep.subr.bf16.mxu0 0
    %714 = vmatpush2.bf16.msra.mxu0 0
    %715 = vmatprep.subr.bf16.mxu0 0
    %716 = vmatpush2.bf16.msra.mxu0 0
    %717 = vmatprep.subr.bf16.mxu0 0
    %718 = vmatpush2.bf16.msra.mxu0 0
    %719 = vmatprep.subr.bf16.mxu0 0
    %720 = vmatpush2.bf16.msra.mxu0 0
    %721 = vmatprep.subr.bf16.mxu0 0
    %722 = vmatpush2.bf16.msra.mxu0 0
    %723 = vmatprep.subr.bf16.mxu0 0
    %724 = vmatpush2.bf16.msra.mxu0 0
    %725 = vmatprep.subr.bf16.mxu0 0
    %726 = vmatpush2.bf16.msra.mxu0 0
    %727 = vmatprep.subr.bf16.mxu0 0
    %728 = vmatpush2.bf16.msra.mxu0 0
    %729 = vmatprep.mubr.bf16.mxu0 0
    %730 = vmatmul.mubr.bf16.gmra.mxu0 %v624
    %v731 = vpop.f32.mrf.mxu0
    %v732 = vadd.f32 %v647, %v731
    %v733 = vpop.f32.mrf.mxu0
    %v734 = vpop.f32.mrf.mxu0
    %v735 = vadd.f32 %v647, %v734
    %v736 = vpop.f32.mrf.mxu0
    %737 = vmatprep.mubr.bf16.mxu0 0
    %738 = vmatmul.mubr.bf16.gmra.mxu0 %v625
    %v739 = vpop.f32.mrf.mxu0
    %v740 = vadd.f32 %v647, %v739
    %v741 = vpop.f32.mrf.mxu0
    %v742 = vpop.f32.mrf.mxu0
    %v743 = vadd.f32 %v647, %v742
    %v744 = vpop.f32.mrf.mxu0
    %745 = vdwg.mxu0
    %v746 = vadd.f32 %v102, %v732
    %v747 = vadd.f32 %v103, %v735
    %v748 = vadd.f32 %v104, %v740
    %v749 = vadd.f32 %v105, %v743
    %vm750 = vcmp.ge.f32.partialorder %v746, 0.0
    %vm751 = vcmp.ge.f32.partialorder %v747, 0.0
    %vm752 = vcmp.ge.f32.partialorder %v748, 0.0
    %vm753 = vcmp.ge.f32.partialorder %v749, 0.0
    %v754 = vstv %s101
    %v755 = vmul.f32 %v754, %v746
    %v756 = vmul.f32 %v754, %v747
    %v757 = vmul.f32 %v754, %v748
    %v758 = vmul.f32 %v754, %v749
    %v759 = vsel %vm750, %v746, %v755
    %v760 = vsel %vm751, %v747, %v756
    %v761 = vsel %vm752, %v748, %v757
    %v762 = vsel %vm753, %v749, %v758
    %763 = vst [vmem:[#allocation12] sm:$0xff] %v759
    %764 = vst [vmem:[#allocation12 + $0x8] sm:$0xff] %v760
    %765 = vst [vmem:[#allocation12 + $0x10] sm:$0xff] %v761
    %766 = vst [vmem:[#allocation12 + $0x18] sm:$0xff] %v762
    // Predicated region
    $region54: #{regular_bottleneck_packed.1} parent=1 // pred_check
      _
    $region55: #{regular_bottleneck_packed.1} parent=1 // pred_check_branch
      %768 = sbr.rel (0) target = $region57
    $region56: #{regular_bottleneck_packed.1} parent=1 // pred_region
      %s770 = ssub.s32 512, 512
      %771 = vsyncadd [#allocation4], %s770
      %s772 = sshll.u32 [#allocation12], 4
      %s773 = int_to_ptr.vmem [resolvable:$true] %s772
      %778 = dma.vmem_to_hbm [thread:$0]  %s773, 512, %s8, [#allocation4], 128, 128, 8
    $region57: #{regular_bottleneck_packed.1} parent=1 // pred_fallthru
      _
    // Predicated region
    $region58: #{regular_bottleneck_packed.1} parent=1 // pred_check
      _
    $region59: #{regular_bottleneck_packed.1} parent=1 // pred_check_branch
      %780 = sbr.rel (0) target = $region61
    $region60: #{regular_bottleneck_packed.1} parent=1 // pred_region
      %781 = dma.done [#allocation4], 512
    $region61: #{regular_bottleneck_packed.1} parent=1 // pred_fallthru
      _
    %782 = vsyncpa [#allocation3], 1
    %783 = vsyncpa [#allocation8], 1
    %784 = vsyncpa [#allocation11], 1
    %785 = vsyncpa [#allocation4], 1
    %786 = vsyncpa [#allocation5], 1

</llo_original>
